<compile_context>
chip_gen: v7x
topology: tpu7x:2x2x1
jax: 0.10.0
libtpu: 0.0.40
codegen_flags: <defaults>
</compile_context>

<pallas_src>
import functools

import jax
import jax.numpy as jnp
from jax.experimental import pallas as pl
from jax.experimental.pallas import tpu as pltpu


def _round_up(x, m):
    return ((x + m - 1) // m) * m


def _vmem_limit(need_bytes):
    # Size the scoped VMEM limit to the actual footprint (v5e/v6e defaults are
    # 16/32 MiB even though physical VMEM is 128 MiB); cap at v7x's 64 MiB.
    return int(min(max(need_bytes + (2 << 20), 16 << 20), 64 << 20))


def _choose_d_tile(n_pad, d_pad, itemsize, budget_bytes=20 << 20):
    """Column tile of the table slab: a multiple of 128 that divides D_pad,
    keeps one buffered tile under ~20 MiB (so 2x input buffering + output stays
    well inside v7x's 64 MiB physical VMEM) and, when D_pad >= 256, leaves at
    least two tiles so the 'parallel' grid axis can use both v7x TensorCores."""
    if d_pad <= 128:
        return d_pad
    cap = min(budget_bytes // (n_pad * itemsize), d_pad - 128)
    cap = max(128, (cap // 128) * 128)
    dt = int(cap)
    while d_pad % dt:
        dt -= 128
    return dt


def _multi_embedding_kernel(idx_ref, tab_ref, o_ref, *, scale):
    # idx_ref: (B_pad, M) int32 — flattened per-batch indices (M = K*L), already
    #          offset into the concatenated table; padded batch rows hold -1.
    # tab_ref: (N_pad, Dt)       — all tables concatenated row-wise (bf16/f32),
    #          current D-column tile.
    # o_ref:   (B_pad, Dt) f32   — aggregated output tile (lane-dense).
    idx = idx_ref[...]
    b_pad, m = idx.shape
    n_pad = tab_ref.shape[0]
    tab = tab_ref[...]

    # counts[b, n] = #positions of batch b that look up row n of the slab.
    # One vectorized compare (VPU) + sum over the K*L axis (VPU/XLU). Padded
    # (-1) or out-of-range indices never match and are silently dropped
    # (torch.nn.Embedding would raise); 'mean' still divides by K*L.
    lane_n = jax.lax.broadcasted_iota(jnp.int32, (b_pad, m, n_pad), 2)
    hits = (lane_n == idx[:, :, None]).astype(jnp.float32)
    counts = jnp.sum(hits, axis=1)                         # (B_pad, N_pad) f32

    # Single MXU pass; counts are small integers, exact in bf16.
    acc = jnp.dot(counts.astype(tab.dtype), tab,
                  preferred_element_type=jnp.float32)      # (B_pad, Dt) f32
    if scale != 1.0:                                       # scale the f32 acc
        acc = acc * scale
    o_ref[...] = acc.astype(o_ref.dtype)


def prepare_multi_embedding(tables, table_dtype=jnp.bfloat16):
    """One-time (init) packing of the per-feature embedding tables.

    Concatenates all (n_k, D) tables row-wise, zero-pads to a lane/sublane
    aligned (N_pad, D_pad) slab and casts to `table_dtype`.  bf16 is the
    recommended/performance default (MXU-native on v5e/v6e/v7x, half the VMEM);
    pass jnp.float32 for exact numerical parity with the torch module.
    Do NOT call this per forward step.
    """
    assert len(tables) > 0
    d = int(tables[0].shape[1])
    sizes = [int(t.shape[0]) for t in tables]
    offsets, running = [], 0
    for n in sizes:
        offsets.append(running)
        running += n
    sum_n = running
    n_pad = _round_up(sum_n, 128)
    d_pad = _round_up(d, 128)
    tab = jnp.concatenate([t.astype(jnp.float32) for t in tables], axis=0)
    tab = jnp.pad(tab, ((0, n_pad - sum_n), (0, d_pad - d))).astype(table_dtype)
    return {
        "tab_cat": tab,                 # (N_pad, D_pad)
        "offsets": tuple(offsets),      # static per-table row offsets
        "num_tables": len(tables),
        "embedding_dim": d,
        "num_rows": sum_n,
    }


def multi_embedding(params, xs, aggr="mean"):
    """xs: list of (B, L) integer index arrays, one per table. Returns (B, D)."""
    k = params["num_tables"]
    d = params["embedding_dim"]
    assert len(xs) == k and k > 0
    b, l = xs[0].shape
    m = k * l

    if aggr == "mean":
        scale = 1.0 / float(m)
    elif aggr == "sum":
        scale = 1.0
    else:
        raise NotImplementedError(f"aggr={aggr!r} not implemented in Pallas kernel")

    tab = params["tab_cat"]
    n_pad, d_pad = tab.shape
    b_pad = _round_up(b, 8)

    # Per-call index packing only (cheap): offset each table's indices into the
    # concatenated slab, flatten to (B, K*L), pad batch rows with -1.
    idx = jnp.stack(
        [x.astype(jnp.int32) + off for x, off in zip(xs, params["offsets"])], axis=1
    ).reshape(b, m)
    idx = jnp.pad(idx, ((0, b_pad - b), (0, 0)), constant_values=-1)

    kernel = functools.partial(_multi_embedding_kernel, scale=scale)

    itemsize = tab.dtype.itemsize
    d_tile = _choose_d_tile(n_pad, d_pad, itemsize)
    num_d_tiles = d_pad // d_tile

    # VMEM footprint estimate (arrays + in-kernel intermediates, f32-sized).
    interm = (b_pad * _round_up(m, 8) * n_pad + b_pad * n_pad + b_pad * d_tile) * 4
    idx_bytes = b_pad * _round_up(m, 128) * 4
    tab_tile_bytes = n_pad * d_tile * itemsize
    out_tile_bytes = b_pad * d_tile * 4

    if num_d_tiles == 1:
        # Whole problem in one shot: grid-less call, whole-array VMEM refs,
        # single-buffered (no pointless double buffering of the table slab).
        need = idx_bytes + tab_tile_bytes + out_tile_bytes + interm
        out_padded = pl.pallas_call(
            kernel,
            out_shape=jax.ShapeDtypeStruct((b_pad, d_pad), jnp.float32),
            in_specs=[
                pl.BlockSpec(memory_space=pltpu.MemorySpace.VMEM),   # indices
                pl.BlockSpec(memory_space=pltpu.MemorySpace.VMEM),   # table slab
            ],
            out_specs=pl.BlockSpec(memory_space=pltpu.MemorySpace.VMEM),
            compiler_params=pltpu.CompilerParams(
                vmem_limit_bytes=_vmem_limit(need),
            ),
        )(idx, tab)
    else:
        # Tile D with a 'parallel' grid axis: independent column tiles shard
        # across v7x's two TensorCores (neutral on v5e/v6e single-TC chips).
        need = 2 * (idx_bytes + tab_tile_bytes + out_tile_bytes) + interm
        out_padded = pl.pallas_call(
            kernel,
            out_shape=jax.ShapeDtypeStruct((b_pad, d_pad), jnp.float32),
            grid=(num_d_tiles,),
            in_specs=[
                pl.BlockSpec((b_pad, m), lambda j: (0, 0)),          # indices
                pl.BlockSpec((n_pad, d_tile), lambda j: (0, j)),     # table tile
            ],
            out_specs=pl.BlockSpec((b_pad, d_tile), lambda j: (0, j)),
            compiler_params=pltpu.CompilerParams(
                dimension_semantics=("parallel",),
                vmem_limit_bytes=_vmem_limit(need),
            ),
        )(idx, tab)

    return out_padded[:b, :d]


if __name__ == "__main__":
    key = jax.random.PRNGKey(0)
    num_embeddings = (7, 11, 5)   # three embedding tables
    embedding_dim = 32
    B, L = 2, 8                   # each x_k has shape (B, L)

    keys = jax.random.split(key, 2 * len(num_embeddings))
    # torch.nn.Embedding default init: N(0, 1)
    tables = [
        jax.random.normal(keys[i], (n, embedding_dim), jnp.float32)
        for i, n in enumerate(num_embeddings)
    ]
    xs = [
        jax.random.randint(keys[len(num_embeddings) + i], (B, L), 0, n, dtype=jnp.int32)
        for i, n in enumerate(num_embeddings)
    ]

    # Pure-JAX references (gather + cat + aggr), matching the torch forward.
    ref_mean_f32 = jnp.concatenate(
        [tables[i][xs[i]] for i in range(len(xs))], axis=1
    ).mean(axis=1)
    tabs_q = [t.astype(jnp.bfloat16).astype(jnp.float32) for t in tables]
    ref_mean_q = jnp.concatenate(
        [tabs_q[i][xs[i]] for i in range(len(xs))], axis=1
    ).mean(axis=1)
    ref_sum_q = jnp.concatenate(
        [tabs_q[i][xs[i]] for i in range(len(xs))], axis=1
    ).sum(axis=1)

    # --- 1) aggr='mean', bf16 table storage (recommended performance path) ---
    params_bf16 = prepare_multi_embedding(tables, table_dtype=jnp.bfloat16)
    out_mean = jax.block_until_ready(multi_embedding(params_bf16, xs, aggr="mean"))
    assert out_mean.shape == (B, embedding_dim)
    # exact vs. a reference that uses the same bf16 weight quantization
    assert jnp.allclose(out_mean, ref_mean_q, atol=1e-4, rtol=1e-4)
    # within the documented bf16 accuracy budget vs. the exact f32 module
    assert jnp.allclose(out_mean, ref_mean_f32, atol=2e-2, rtol=2e-2)

    # --- 2) aggr='sum', bf16 table storage ---
    out_sum = jax.block_until_ready(multi_embedding(params_bf16, xs, aggr="sum"))
    assert jnp.allclose(out_sum, ref_sum_q, atol=1e-3, rtol=1e-3)

    # --- 3) aggr='mean', float32 tables (exact-parity option with the module) ---
    params_f32 = prepare_multi_embedding(tables, table_dtype=jnp.float32)
    out_mean_f32 = jax.block_until_ready(multi_embedding(params_f32, xs, aggr="mean"))
    assert jnp.allclose(out_mean_f32, ref_mean_f32, atol=1e-3, rtol=1e-3)

    # --- 4) wider embedding_dim to exercise the tiled 'parallel'-grid path ---
    D2 = 256
    tables2 = [
        jax.random.normal(keys[i], (n, D2), jnp.float32)
        for i, n in enumerate(num_embeddings)
    ]
    params2 = prepare_multi_embedding(tables2, table_dtype=jnp.bfloat16)
    out2 = jax.block_until_ready(multi_embedding(params2, xs, aggr="mean"))
    tabs2_q = [t.astype(jnp.bfloat16).astype(jnp.float32) for t in tables2]
    ref2_q = jnp.concatenate(
        [tabs2_q[i][xs[i]] for i in range(len(xs))], axis=1
    ).mean(axis=1)
    assert out2.shape == (B, D2)
    assert jnp.allclose(out2, ref2_q, atol=1e-4, rtol=1e-4)

    print("KERNEL_OK")
</pallas_src>

<mosaic_0001>
module attributes {stable_mosaic.version = 11 : i64} {
  func.func @_multi_embedding_kernel(%arg0: memref<8x24xi32, #tpu.memory_space<vmem>>, %arg1: memref<128x128xbf16, #tpu.memory_space<vmem>>, %arg2: memref<8x128xf32, #tpu.memory_space<vmem>>) attributes {dimension_semantics = [], scalar_prefetch = 0 : i64, scratch_operands = 0 : i64, tpu.core_type = #tpu.core_type<tc>} {
    %c0 = arith.constant 0 : index
    %c0_0 = arith.constant 0 : index
    %0 = vector.load %arg0[%c0, %c0_0] : memref<8x24xi32, #tpu.memory_space<vmem>>, vector<8x24xi32>
    %c0_1 = arith.constant 0 : index
    %c0_2 = arith.constant 0 : index
    %1 = vector.load %arg1[%c0_1, %c0_2] : memref<128x128xbf16, #tpu.memory_space<vmem>>, vector<128x128xbf16>
    %2 = tpu.iota {dimensions = array<i32: 2>} : vector<8x24x128xi32>
    %3 = vector.shape_cast %0 : vector<8x24xi32> to vector<8x24x1xi32>
    %4 = vector.broadcast %3 : vector<8x24x1xi32> to vector<8x24x128xi32>
    %5 = arith.cmpi eq, %2, %4 : vector<8x24x128xi32>
    %6 = arith.extui %5 : vector<8x24x128xi1> to vector<8x24x128xi32>
    %7 = arith.sitofp %6 : vector<8x24x128xi32> to vector<8x24x128xf32>
    %cst = arith.constant dense<0.000000e+00> : vector<8x128xf32>
    %8 = vector.multi_reduction <add>, %7, %cst [1] : vector<8x24x128xf32> to vector<8x128xf32>
    %9 = arith.truncf %8 : vector<8x128xf32> to vector<8x128xbf16>
    %cst_3 = arith.constant dense<0.000000e+00> : vector<8x128xf32>
    %10 = tpu.matmul %9, %1, %cst_3 {dimension_numbers = #tpu.dot_dimension_numbers<[1], [0], [0], [1], [0, 0, 1, 1], [], []>} : vector<8x128xbf16>, vector<128x128xbf16>, vector<8x128xf32> -> vector<8x128xf32>
    %cst_4 = arith.constant 0.0416666679 : f32
    %11 = vector.broadcast %cst_4 : f32 to vector<8x128xf32>
    %12 = arith.mulf %10, %11 : vector<8x128xf32>
    %c0_5 = arith.constant 0 : index
    %c0_6 = arith.constant 0 : index
    %13 = vector.load %arg2[%c0_5, %c0_6] : memref<8x128xf32, #tpu.memory_space<vmem>>, vector<8x128xf32>
    tpu.vector_store %arg2[%c0_5, %c0_6], %12 {strides = array<i32>} : memref<8x128xf32, #tpu.memory_space<vmem>>, vector<8x128xf32>,
    return
  }
}

</mosaic_0001>

<llo_original>
// kernel: tpu_custom_call.1
$region0: #{tpu_custom_call.1}
  #allocation0 [shape = 'u32[]', space=smem, size = 0x4, offset = 0x4, fixed_abs, tag = 'smem constant byte address 0x4 - core index']
  #allocation1 [shape = 'u32[144,128]{1,0:T(1,128)}', space=vmem, size = 0x12000, scoped, tag = 'internal scratch']
  %s0 = inlined_call_operand.hbm [shape: s32[8,24], index: 0, kind: input, shape index: {}]
  %s1 = inlined_call_operand.hbm [shape: bf16[128,128], index: 1, kind: input, shape index: {}]
  %s2 = inlined_call_operand.hbm [shape: f32[8,128], index: 2, kind: output, shape index: {}]
  %s3 = sld [smem:[#allocation0]]
  $region26: #{tpu_custom_call.1} parent=0
    _
  %s5 = ssub.s32 1, %s3
  %s6 = scalar_select 0, %s5, %s3
  $region1: #{tpu_custom_call.1} parent=0
    #allocation2 [shape = 'u8[4096]{0}', space=vmem, size = 0x1000, scoped, tag = 'input window, operand 0, single buffered']
    #allocation3 [shape = 's32[1]{0}', space=sflag, size = 0x4, scoped, tag = 'scoped memory for tpu_custom_call.1']
    #allocation4 [shape = 's32[1]{0}', space=sflag, size = 0x4, scoped, tag = 'scoped memory for tpu_custom_call.1']
    #allocation5 [shape = 'u8[32768]{0}', space=vmem, size = 0x8000, scoped, tag = 'input window, operand 1, single buffered']
    #allocation6 [shape = 's32[1]{0}', space=sflag, size = 0x4, scoped, tag = 'scoped memory for tpu_custom_call.1']
    #allocation7 [shape = 'u8[4096]{0}', space=vmem, size = 0x1000, scoped, tag = 'output window, operand 0, single buffered']
    %7 = vsyncpa [#allocation3], 0
    %8 = vsyncpa [#allocation6], 0
    %9 = vsyncpa [#allocation4], 0
    // Predicated region
    $region2: #{tpu_custom_call.1} parent=1 // pred_check
      _
    $region3: #{tpu_custom_call.1} parent=1 // pred_check_branch
      %11 = sbr.rel (0) target = $region5
    $region4: #{tpu_custom_call.1} parent=1 // pred_region
      %s13 = ssub.s32 128, 128
      %14 = vsyncadd [#allocation3], %s13
      %s16 = sshll.u32 [#allocation2], 4
      %s17 = int_to_ptr.vmem [resolvable:$true] %s16
      %19 = dma.hbm_to_vmem [thread:$0]  %s0, 128, %s17, [#allocation3]
    $region5: #{tpu_custom_call.1} parent=1 // pred_fallthru
      _
    // Predicated region
    $region6: #{tpu_custom_call.1} parent=1 // pred_check
      _
    $region7: #{tpu_custom_call.1} parent=1 // pred_check_branch
      %21 = sbr.rel (0) target = $region9
    $region8: #{tpu_custom_call.1} parent=1 // pred_region
      %s23 = ssub.s32 1024, 1024
      %24 = vsyncadd [#allocation6], %s23
      %s25 = sshll.u32 [#allocation5], 4
      %s26 = int_to_ptr.vmem [resolvable:$true] %s25
      %31 = dma.hbm_to_vmem [thread:$0]  %s1, 1024, %s26, [#allocation6], 64, 64, 4
    $region9: #{tpu_custom_call.1} parent=1 // pred_fallthru
      _
    // Predicated region
    $region10: #{tpu_custom_call.1} parent=1 // pred_check
      _
    $region11: #{tpu_custom_call.1} parent=1 // pred_check_branch
      %33 = sbr.rel (0) target = $region13
    $region12: #{tpu_custom_call.1} parent=1 // pred_region
      %34 = dma.done [#allocation3], 128
    $region13: #{tpu_custom_call.1} parent=1 // pred_fallthru
      _
    // Predicated region
    $region14: #{tpu_custom_call.1} parent=1 // pred_check
      _
    $region15: #{tpu_custom_call.1} parent=1 // pred_check_branch
      %36 = sbr.rel (0) target = $region17
    $region16: #{tpu_custom_call.1} parent=1 // pred_region
      %37 = dma.done [#allocation6], 1024
    $region17: #{tpu_custom_call.1} parent=1 // pred_fallthru
      _
    %v39 = vld [vmem:[#allocation2] sm:$0xff]
    %v40 = vld [vmem:[#allocation5] sm:$0xf]
    %v41 = vld [vmem:[#allocation5 + $0x4] sm:$0xf]
    %v42 = vld [vmem:[#allocation5 + $0x8] sm:$0xf]
    %v43 = vld [vmem:[#allocation5 + $0xc] sm:$0xf]
    %v44 = vld [vmem:[#allocation5 + $0x10] sm:$0xf]
    %v45 = vld [vmem:[#allocation5 + $0x14] sm:$0xf]
    %v46 = vld [vmem:[#allocation5 + $0x18] sm:$0xf]
    %v47 = vld [vmem:[#allocation5 + $0x1c] sm:$0xf]
    %v48 = vld [vmem:[#allocation5 + $0x20] sm:$0xf]
    %v49 = vld [vmem:[#allocation5 + $0x24] sm:$0xf]
    %v50 = vld [vmem:[#allocation5 + $0x28] sm:$0xf]
    %v51 = vld [vmem:[#allocation5 + $0x2c] sm:$0xf]
    %v52 = vld [vmem:[#allocation5 + $0x30] sm:$0xf]
    %v53 = vld [vmem:[#allocation5 + $0x34] sm:$0xf]
    %v54 = vld [vmem:[#allocation5 + $0x38] sm:$0xf]
    %v55 = vld [vmem:[#allocation5 + $0x3c] sm:$0xf]
    %v56 = vlaneseq
    %v57 = vand.u32 %v56, 127
    %v58 = vlaneseq
    %v59 = vshrl.u32 %v58, 7
    %v60 = vsub.s32 0, %v59
    %v61 = vrot.slane %v39, %v60
    %63 = vbcast.lane.b32.xlu0 %v61, 256
    %v64 = vpop.permute.xlu0 %63
    %s66 = sor.u32 256, 8
    %67 = vbcast.lane.b32.xlu0 %v61, %s66
    %v68 = vpop.permute.xlu0 %67
    %s70 = sor.u32 256, 16
    %71 = vbcast.lane.b32.xlu0 %v61, %s70
    %v72 = vpop.permute.xlu0 %71
    %v73 = vlaneseq
    %v74 = vshrl.u32 %v73, 7
    %v75 = vsub.s32 1, %v74
    %v76 = vrot.slane %v39, %v75
    %78 = vbcast.lane.b32.xlu0 %v76, 256
    %v79 = vpop.permute.xlu0 %78
    %s81 = sor.u32 256, 8
    %82 = vbcast.lane.b32.xlu0 %v76, %s81
    %v83 = vpop.permute.xlu0 %82
    %s85 = sor.u32 256, 16
    %86 = vbcast.lane.b32.xlu0 %v76, %s85
    %v87 = vpop.permute.xlu0 %86
    %v88 = vlaneseq
    %v89 = vshrl.u32 %v88, 7
    %v90 = vsub.s32 2, %v89
    %v91 = vrot.slane %v39, %v90
    %93 = vbcast.lane.b32.xlu0 %v91, 256
    %v94 = vpop.permute.xlu0 %93
    %s96 = sor.u32 256, 8
    %97 = vbcast.lane.b32.xlu0 %v91, %s96
    %v98 = vpop.permute.xlu0 %97
    %s100 = sor.u32 256, 16
    %101 = vbcast.lane.b32.xlu0 %v91, %s100
    %v102 = vpop.permute.xlu0 %101
    %v103 = vlaneseq
    %v104 = vshrl.u32 %v103, 7
    %v105 = vsub.s32 3, %v104
    %v106 = vrot.slane %v39, %v105
    %108 = vbcast.lane.b32.xlu0 %v106, 256
    %v109 = vpop.permute.xlu0 %108
    %s111 = sor.u32 256, 8
    %112 = vbcast.lane.b32.xlu0 %v106, %s111
    %v113 = vpop.permute.xlu0 %112
    %s115 = sor.u32 256, 16
    %116 = vbcast.lane.b32.xlu0 %v106, %s115
    %v117 = vpop.permute.xlu0 %116
    %v118 = vlaneseq
    %v119 = vshrl.u32 %v118, 7
    %v120 = vsub.s32 4, %v119
    %v121 = vrot.slane %v39, %v120
    %123 = vbcast.lane.b32.xlu0 %v121, 256
    %v124 = vpop.permute.xlu0 %123
    %s126 = sor.u32 256, 8
    %127 = vbcast.lane.b32.xlu0 %v121, %s126
    %v128 = vpop.permute.xlu0 %127
    %s130 = sor.u32 256, 16
    %131 = vbcast.lane.b32.xlu0 %v121, %s130
    %v132 = vpop.permute.xlu0 %131
    %v133 = vlaneseq
    %v134 = vshrl.u32 %v133, 7
    %v135 = vsub.s32 5, %v134
    %v136 = vrot.slane %v39, %v135
    %138 = vbcast.lane.b32.xlu0 %v136, 256
    %v139 = vpop.permute.xlu0 %138
    %s141 = sor.u32 256, 8
    %142 = vbcast.lane.b32.xlu0 %v136, %s141
    %v143 = vpop.permute.xlu0 %142
    %s145 = sor.u32 256, 16
    %146 = vbcast.lane.b32.xlu0 %v136, %s145
    %v147 = vpop.permute.xlu0 %146
    %v148 = vlaneseq
    %v149 = vshrl.u32 %v148, 7
    %v150 = vsub.s32 6, %v149
    %v151 = vrot.slane %v39, %v150
    %153 = vbcast.lane.b32.xlu0 %v151, 256
    %v154 = vpop.permute.xlu0 %153
    %s156 = sor.u32 256, 8
    %157 = vbcast.lane.b32.xlu0 %v151, %s156
    %v158 = vpop.permute.xlu0 %157
    %s160 = sor.u32 256, 16
    %161 = vbcast.lane.b32.xlu0 %v151, %s160
    %v162 = vpop.permute.xlu0 %161
    %v163 = vlaneseq
    %v164 = vshrl.u32 %v163, 7
    %v165 = vsub.s32 7, %v164
    %v166 = vrot.slane %v39, %v165
    %168 = vbcast.lane.b32.xlu0 %v166, 256
    %v169 = vpop.permute.xlu0 %168
    %s171 = sor.u32 256, 8
    %172 = vbcast.lane.b32.xlu0 %v166, %s171
    %v173 = vpop.permute.xlu0 %172
    %s175 = sor.u32 256, 16
    %176 = vbcast.lane.b32.xlu0 %v166, %s175
    %v177 = vpop.permute.xlu0 %176
    %vm178 = vcmp.eq.s32.totalorder %v57, %v64
    %vm179 = vcmp.eq.s32.totalorder %v57, %v68
    %vm180 = vcmp.eq.s32.totalorder %v57, %v72
    %vm181 = vcmp.eq.s32.totalorder %v57, %v79
    %vm182 = vcmp.eq.s32.totalorder %v57, %v83
    %vm183 = vcmp.eq.s32.totalorder %v57, %v87
    %vm184 = vcmp.eq.s32.totalorder %v57, %v94
    %vm185 = vcmp.eq.s32.totalorder %v57, %v98
    %vm186 = vcmp.eq.s32.totalorder %v57, %v102
    %vm187 = vcmp.eq.s32.totalorder %v57, %v109
    %vm188 = vcmp.eq.s32.totalorder %v57, %v113
    %vm189 = vcmp.eq.s32.totalorder %v57, %v117
    %vm190 = vcmp.eq.s32.totalorder %v57, %v124
    %vm191 = vcmp.eq.s32.totalorder %v57, %v128
    %vm192 = vcmp.eq.s32.totalorder %v57, %v132
    %vm193 = vcmp.eq.s32.totalorder %v57, %v139
    %vm194 = vcmp.eq.s32.totalorder %v57, %v143
    %vm195 = vcmp.eq.s32.totalorder %v57, %v147
    %vm196 = vcmp.eq.s32.totalorder %v57, %v154
    %vm197 = vcmp.eq.s32.totalorder %v57, %v158
    %vm198 = vcmp.eq.s32.totalorder %v57, %v162
    %vm199 = vcmp.eq.s32.totalorder %v57, %v169
    %vm200 = vcmp.eq.s32.totalorder %v57, %v173
    %vm201 = vcmp.eq.s32.totalorder %v57, %v177
    %v202 = vsel %vm178, 1, 0
    %v203 = vsel %vm179, 1, 0
    %v204 = vsel %vm180, 1, 0
    %v205 = vsel %vm181, 1, 0
    %v206 = vsel %vm182, 1, 0
    %v207 = vsel %vm183, 1, 0
    %v208 = vsel %vm184, 1, 0
    %v209 = vsel %vm185, 1, 0
    %v210 = vsel %vm186, 1, 0
    %v211 = vsel %vm187, 1, 0
    %v212 = vsel %vm188, 1, 0
    %v213 = vsel %vm189, 1, 0
    %v214 = vsel %vm190, 1, 0
    %v215 = vsel %vm191, 1, 0
    %v216 = vsel %vm192, 1, 0
    %v217 = vsel %vm193, 1, 0
    %v218 = vsel %vm194, 1, 0
    %v219 = vsel %vm195, 1, 0
    %v220 = vsel %vm196, 1, 0
    %v221 = vsel %vm197, 1, 0
    %v222 = vsel %vm198, 1, 0
    %v223 = vsel %vm199, 1, 0
    %v224 = vsel %vm200, 1, 0
    %v225 = vsel %vm201, 1, 0
    %v226 = vcvt.s32.f32 %v202
    %v227 = vcvt.s32.f32 %v203
    %v228 = vcvt.s32.f32 %v204
    %v229 = vcvt.s32.f32 %v205
    %v230 = vcvt.s32.f32 %v206
    %v231 = vcvt.s32.f32 %v207
    %v232 = vcvt.s32.f32 %v208
    %v233 = vcvt.s32.f32 %v209
    %v234 = vcvt.s32.f32 %v210
    %v235 = vcvt.s32.f32 %v211
    %v236 = vcvt.s32.f32 %v212
    %v237 = vcvt.s32.f32 %v213
    %v238 = vcvt.s32.f32 %v214
    %v239 = vcvt.s32.f32 %v215
    %v240 = vcvt.s32.f32 %v216
    %v241 = vcvt.s32.f32 %v217
    %v242 = vcvt.s32.f32 %v218
    %v243 = vcvt.s32.f32 %v219
    %v244 = vcvt.s32.f32 %v220
    %v245 = vcvt.s32.f32 %v221
    %v246 = vcvt.s32.f32 %v222
    %v247 = vcvt.s32.f32 %v223
    %v248 = vcvt.s32.f32 %v224
    %v249 = vcvt.s32.f32 %v225
    %v250 = vadd.f32 %v226, %v227
    %v251 = vadd.f32 %v250, %v228
    %v252 = vrot.slane %v251, 4
    %v253 = vadd.f32 %v251, %v252
    %v254 = vrot.slane %v253, 2
    %v255 = vadd.f32 %v253, %v254
    %v256 = vrot.slane %v255, 1
    %v257 = vadd.f32 %v255, %v256
    %v258 = vadd.f32 %v229, %v230
    %v259 = vadd.f32 %v258, %v231
    %v260 = vrot.slane %v259, 4
    %v261 = vadd.f32 %v259, %v260
    %v262 = vrot.slane %v261, 2
    %v263 = vadd.f32 %v261, %v262
    %v264 = vrot.slane %v263, 1
    %v265 = vadd.f32 %v263, %v264
    %v266 = vadd.f32 %v232, %v233
    %v267 = vadd.f32 %v266, %v234
    %v268 = vrot.slane %v267, 4
    %v269 = vadd.f32 %v267, %v268
    %v270 = vrot.slane %v269, 2
    %v271 = vadd.f32 %v269, %v270
    %v272 = vrot.slane %v271, 1
    %v273 = vadd.f32 %v271, %v272
    %v274 = vadd.f32 %v235, %v236
    %v275 = vadd.f32 %v274, %v237
    %v276 = vrot.slane %v275, 4
    %v277 = vadd.f32 %v275, %v276
    %v278 = vrot.slane %v277, 2
    %v279 = vadd.f32 %v277, %v278
    %v280 = vrot.slane %v279, 1
    %v281 = vadd.f32 %v279, %v280
    %v282 = vadd.f32 %v238, %v239
    %v283 = vadd.f32 %v282, %v240
    %v284 = vrot.slane %v283, 4
    %v285 = vadd.f32 %v283, %v284
    %v286 = vrot.slane %v285, 2
    %v287 = vadd.f32 %v285, %v286
    %v288 = vrot.slane %v287, 1
    %v289 = vadd.f32 %v287, %v288
    %v290 = vadd.f32 %v241, %v242
    %v291 = vadd.f32 %v290, %v243
    %v292 = vrot.slane %v291, 4
    %v293 = vadd.f32 %v291, %v292
    %v294 = vrot.slane %v293, 2
    %v295 = vadd.f32 %v293, %v294
    %v296 = vrot.slane %v295, 1
    %v297 = vadd.f32 %v295, %v296
    %v298 = vadd.f32 %v244, %v245
    %v299 = vadd.f32 %v298, %v246
    %v300 = vrot.slane %v299, 4
    %v301 = vadd.f32 %v299, %v300
    %v302 = vrot.slane %v301, 2
    %v303 = vadd.f32 %v301, %v302
    %v304 = vrot.slane %v303, 1
    %v305 = vadd.f32 %v303, %v304
    %v306 = vadd.f32 %v247, %v248
    %v307 = vadd.f32 %v306, %v249
    %v308 = vrot.slane %v307, 4
    %v309 = vadd.f32 %v307, %v308
    %v310 = vrot.slane %v309, 2
    %v311 = vadd.f32 %v309, %v310
    %v312 = vrot.slane %v311, 1
    %v313 = vadd.f32 %v311, %v312
    %v314 = vpack.c.bf16 %v257, %v257
    %v315 = vpack.c.bf16 %v265, %v265
    %v316 = vpack.c.bf16 %v273, %v273
    %v317 = vpack.c.bf16 %v281, %v281
    %v318 = vpack.c.bf16 %v289, %v289
    %v319 = vpack.c.bf16 %v297, %v297
    %v320 = vpack.c.bf16 %v305, %v305
    %v321 = vpack.c.bf16 %v313, %v313
    %v330 = vunpack.c.l.b16 %v314
    %v331 = vunpack.c.l.b16 %v315
    %v332 = vunpack.c.l.b16 %v316
    %v333 = vunpack.c.l.b16 %v317
    %v334 = vunpack.c.l.b16 %v318
    %v335 = vunpack.c.l.b16 %v319
    %v336 = vunpack.c.l.b16 %v320
    %v337 = vunpack.c.l.b16 %v321
    %vm338 = vcmask 1041409
    %v339 = vsel %vm338, %v331, %v330
    %vm340 = vcmask 1042434
    %v341 = vsel %vm340, %v332, %v339
    %vm342 = vcmask 1043459
    %v343 = vsel %vm342, %v333, %v341
    %vm344 = vcmask 1044484
    %v345 = vsel %vm344, %v334, %v343
    %vm346 = vcmask 1045509
    %v347 = vsel %vm346, %v335, %v345
    %vm348 = vcmask 1046534
    %v349 = vsel %vm348, %v336, %v347
    %vm350 = vcmask 1047559
    %v351 = vsel %vm350, %v337, %v349
    %v352 = vpack.c.b16 %v351, %v351
    %v370 = vunpack.c.l.b16 %v40
    %v371 = vunpack.c.l.b16 %v41
    %v372 = vunpack.c.l.b16 %v42
    %v373 = vunpack.c.l.b16 %v43
    %v374 = vunpack.c.l.b16 %v44
    %v375 = vunpack.c.l.b16 %v45
    %v376 = vunpack.c.l.b16 %v46
    %v377 = vunpack.c.l.b16 %v47
    %v378 = vunpack.c.l.b16 %v48
    %v379 = vunpack.c.l.b16 %v49
    %v380 = vunpack.c.l.b16 %v50
    %v381 = vunpack.c.l.b16 %v51
    %v382 = vunpack.c.l.b16 %v52
    %v383 = vunpack.c.l.b16 %v53
    %v384 = vunpack.c.l.b16 %v54
    %v385 = vunpack.c.l.b16 %v55
    %v386 = vpack.c.b16 %v371, %v370
    %v387 = vpack.c.b16 %v373, %v372
    %v388 = vpack.c.b16 %v375, %v374
    %v389 = vpack.c.b16 %v377, %v376
    %v390 = vpack.c.b16 %v379, %v378
    %v391 = vpack.c.b16 %v381, %v380
    %v392 = vpack.c.b16 %v383, %v382
    %v393 = vpack.c.b16 %v385, %v384
    %402 = vmatprep.subr.bf16.mxu0 0
    %403 = vmatpush1.bf16.msra.mxu0 %v386
    %404 = vmatprep.subr.bf16.mxu0 0
    %405 = vmatpush1.bf16.msra.mxu0 %v387
    %406 = vmatprep.subr.bf16.mxu0 0
    %407 = vmatpush1.bf16.msra.mxu0 %v388
    %408 = vmatprep.subr.bf16.mxu0 0
    %409 = vmatpush1.bf16.msra.mxu0 %v389
    %410 = vmatprep.subr.bf16.mxu0 0
    %411 = vmatpush1.bf16.msra.mxu0 %v390
    %412 = vmatprep.subr.bf16.mxu0 0
    %413 = vmatpush1.bf16.msra.mxu0 %v391
    %414 = vmatprep.subr.bf16.mxu0 0
    %415 = vmatpush1.bf16.msra.mxu0 %v392
    %416 = vmatprep.subr.bf16.mxu0 0
    %417 = vmatpush1.bf16.msra.mxu0 %v393
    %418 = vmatprep.subr.bf16.mxu0 0
    %419 = vmatpush1.bf16.msra.mxu0 0
    %420 = vmatprep.subr.bf16.mxu0 0
    %421 = vmatpush1.bf16.msra.mxu0 0
    %422 = vmatprep.subr.bf16.mxu0 0
    %423 = vmatpush1.bf16.msra.mxu0 0
    %424 = vmatprep.subr.bf16.mxu0 0
    %425 = vmatpush1.bf16.msra.mxu0 0
    %426 = vmatprep.subr.bf16.mxu0 0
    %427 = vmatpush1.bf16.msra.mxu0 0
    %428 = vmatprep.subr.bf16.mxu0 0
    %429 = vmatpush1.bf16.msra.mxu0 0
    %430 = vmatprep.subr.bf16.mxu0 0
    %431 = vmatpush1.bf16.msra.mxu0 0
    %432 = vmatprep.subr.bf16.mxu0 0
    %433 = vmatpush1.bf16.msra.mxu0 0
    %434 = vmatprep.mubr.bf16.mxu0 0
    %435 = vmatmul.mubr.bf16.gmra.mrb[0].mxu0 %v352
    %v436 = vpop.f32.mrb[0].mxu0
    %v437 = vadd.f32 0.0, %v436
    %v438 = vpop.f32.mrb[0].mxu0
    %v439 = vpop.f32.mrb[0].mxu0
    %v440 = vpop.f32.mrb[0].mxu0
    %441 = vdwg.mxu0
    %v442 = vmul.f32 %v437, 0.041666668
    %443 = vst [vmem:[#allocation7] sm:$0xff] %v442
    // Predicated region
    $region18: #{tpu_custom_call.1} parent=1 // pred_check
      _
    $region19: #{tpu_custom_call.1} parent=1 // pred_check_branch
      %445 = sbr.rel (0) target = $region21
    $region20: #{tpu_custom_call.1} parent=1 // pred_region
      %s447 = ssub.s32 128, 128
      %448 = vsyncadd [#allocation4], %s447
      %s450 = sshll.u32 [#allocation7], 4
      %s451 = int_to_ptr.vmem [resolvable:$true] %s450
      %453 = dma.vmem_to_hbm [thread:$0]  %s451, 128, %s2, [#allocation4]
    $region21: #{tpu_custom_call.1} parent=1 // pred_fallthru
      _
    // Predicated region
    $region22: #{tpu_custom_call.1} parent=1 // pred_check
      _
    $region23: #{tpu_custom_call.1} parent=1 // pred_check_branch
      %455 = sbr.rel (0) target = $region25
    $region24: #{tpu_custom_call.1} parent=1 // pred_region
      %456 = dma.done [#allocation4], 128
    $region25: #{tpu_custom_call.1} parent=1 // pred_fallthru
      _
    %457 = vsyncpa [#allocation3], 1
    %458 = vsyncpa [#allocation6], 1
    %459 = vsyncpa [#allocation4], 1

</llo_original>
